<compile_context>
chip_gen: v5e
topology: v5e:2x2
jax: 0.10.0
libtpu: 0.0.40
codegen_flags: <defaults>
</compile_context>

<pallas_src>
import jax
import jax.numpy as jnp
from jax.experimental import pallas as pl
from jax.experimental.pallas import tpu as pltpu


def _round_up(n, m):
    return ((n + m - 1) // m) * m


def _sigmoid(x):
    # sigmoid(x) == 0.5*tanh(0.5*x) + 0.5 : one EUP op, no VPU divide.
    return 0.5 * jnp.tanh(0.5 * x) + 0.5


def sae_kernel(x_ref,
               w1_ref, b1_ref,
               w2_ref, b2_ref,
               w3_ref, b3_ref,
               w4_ref, b4_ref,
               out_ref):
    bf16 = jnp.bfloat16

    # Cast after the DMA: keeps the wrapper free of an extra pass over x.
    x = x_ref[...].astype(bf16)                                       # (tb, M)

    # Layer 1: (tb, M) @ (M, 20)  — bf16 MXU operands, f32 accumulate.
    h1 = _sigmoid(jnp.dot(x, w1_ref[...],
                          preferred_element_type=jnp.float32) + b1_ref[...])
    # Layer 2: (tb, 20) @ (20, 10)
    h2 = _sigmoid(jnp.dot(h1.astype(bf16), w2_ref[...],
                          preferred_element_type=jnp.float32) + b2_ref[...])
    # Layer 3: (tb, 10) @ (10, 20)
    h3 = _sigmoid(jnp.dot(h2.astype(bf16), w3_ref[...],
                          preferred_element_type=jnp.float32) + b3_ref[...])
    # Layer 4 (no activation): (tb, 20) @ (20, M)
    y = jnp.dot(h3.astype(bf16), w4_ref[...],
                preferred_element_type=jnp.float32) + b4_ref[...]

    out_ref[...] = y.astype(out_ref.dtype)


def sae_forward(x, params, *, tb=1024, out_dtype=jnp.float32):
    """x: (B, nb_movies) f32.  params: (in,out) weights, (1,out) biases (f32)."""
    B, M = x.shape
    bf16 = jnp.bfloat16
    f32 = jnp.float32

    # Only the tiny weight/bias arrays are touched in the wrapper.
    w1 = params["w1"].astype(bf16)
    b1 = params["b1"].astype(f32)
    w2 = params["w2"].astype(bf16)
    b2 = params["b2"].astype(f32)
    w3 = params["w3"].astype(bf16)
    b3 = params["b3"].astype(f32)
    w4 = params["w4"].astype(bf16)
    b4 = params["b4"].astype(f32)

    # --- batch-tile sizing ----------------------------------------------
    # Double-buffered (tb, M) in + (tb, M) out tiles must stay well under the
    # smallest default scoped VMEM (v5e: 16 MiB); use a ~12 MiB budget.
    out_bytes = jnp.dtype(out_dtype).itemsize
    per_row_bytes = M * (jnp.dtype(x.dtype).itemsize + out_bytes)
    budget_bytes = 12 * 1024 * 1024
    tb_cap = max(8, (budget_bytes // (2 * per_row_bytes)) // 8 * 8)

    tb = min(tb, tb_cap, _round_up(B, 8))
    if B > 2 * 256:
        # Guarantee >= 2 grid steps (without dropping below 256-row tiles) so
        # the "parallel" batch axis actually feeds both v7x TensorCores.
        tb = min(tb, _round_up(pl.cdiv(B, 2), 8))
    tb = max(tb, 8)

    grid = (pl.cdiv(B, tb),)

    def resident(arr):
        # Constant block index -> Pallas keeps the block VMEM-resident across
        # all batch-grid steps (no per-tile re-DMA of the weights/biases).
        zeros = (0,) * arr.ndim
        return pl.BlockSpec(arr.shape, lambda i: zeros)

    out = pl.pallas_call(
        sae_kernel,
        out_shape=jax.ShapeDtypeStruct((B, M), out_dtype),
        grid=grid,
        in_specs=[
            pl.BlockSpec((tb, M), lambda i: (i, 0)),       # x: batch-tiled
            resident(w1), resident(b1),
            resident(w2), resident(b2),
            resident(w3), resident(b3),
            resident(w4), resident(b4),
        ],
        out_specs=pl.BlockSpec((tb, M), lambda i: (i, 0)),
        compiler_params=pltpu.CompilerParams(
            dimension_semantics=("parallel",)),            # megacore on v7x
    )(x, w1, b1, w2, b2, w3, b3, w4, b4)

    return out


def init_params(key, nb_movies):
    """Mirrors nn.Linear's U(-1/sqrt(in), 1/sqrt(in)) init.
    Weights stored pre-transposed as (in_features, out_features)."""
    dims = [(nb_movies, 20), (20, 10), (10, 20), (20, nb_movies)]
    params = {}
    keys = jax.random.split(key, 2 * len(dims))
    for i, (din, dout) in enumerate(dims):
        bound = 1.0 / jnp.sqrt(jnp.float32(din))
        params[f"w{i + 1}"] = jax.random.uniform(
            keys[2 * i], (din, dout), jnp.float32, minval=-bound, maxval=bound)
        params[f"b{i + 1}"] = jax.random.uniform(
            keys[2 * i + 1], (1, dout), jnp.float32, minval=-bound, maxval=bound)
    return params


def sae_reference(x, p):
    """JAX reference using the same bf16-operand / f32-accumulate recipe."""
    bf16 = jnp.bfloat16
    f32 = jnp.float32
    h = _sigmoid(jnp.dot(x.astype(bf16), p["w1"].astype(bf16),
                         preferred_element_type=f32) + p["b1"])
    h = _sigmoid(jnp.dot(h.astype(bf16), p["w2"].astype(bf16),
                         preferred_element_type=f32) + p["b2"])
    h = _sigmoid(jnp.dot(h.astype(bf16), p["w3"].astype(bf16),
                         preferred_element_type=f32) + p["b3"])
    return jnp.dot(h.astype(bf16), p["w4"].astype(bf16),
                   preferred_element_type=f32) + p["b4"]


if __name__ == "__main__":
    nb_movies = 300   # not a multiple of 128 -> exercises the masked lane store
    batch = 8

    key = jax.random.PRNGKey(0)
    kx, kp = jax.random.split(key)
    x = jax.random.uniform(kx, (batch, nb_movies), jnp.float32)
    params = init_params(kp, nb_movies)

    out = jax.block_until_ready(sae_forward(x, params))
    ref = sae_reference(x, params)
    assert out.shape == (batch, nb_movies)
    # Tolerance accounts for bf16 MXU operands (f32 accumulation).
    assert jnp.allclose(out, ref, atol=2e-2, rtol=2e-2), "mismatch vs JAX reference"

    # Second check: ragged batch with a small forced tile -> exercises the
    # partial-final-block (masked row store) path.
    x2 = jax.random.uniform(jax.random.PRNGKey(1), (20, nb_movies), jnp.float32)
    out2 = jax.block_until_ready(sae_forward(x2, params, tb=8))
    ref2 = sae_reference(x2, params)
    assert out2.shape == (20, nb_movies)
    assert jnp.allclose(out2, ref2, atol=2e-2, rtol=2e-2), "mismatch (ragged batch)"

    print("KERNEL_OK")
</pallas_src>

<mosaic_0001>
module attributes {stable_mosaic.version = 11 : i64} {
  func.func @sae_kernel(%arg0: i32, %arg1: memref<8x300xf32, #tpu.memory_space<vmem>>, %arg2: memref<300x20xbf16, #tpu.memory_space<vmem>>, %arg3: memref<1x20xf32, #tpu.memory_space<vmem>>, %arg4: memref<20x10xbf16, #tpu.memory_space<vmem>>, %arg5: memref<1x10xf32, #tpu.memory_space<vmem>>, %arg6: memref<10x20xbf16, #tpu.memory_space<vmem>>, %arg7: memref<1x20xf32, #tpu.memory_space<vmem>>, %arg8: memref<20x300xbf16, #tpu.memory_space<vmem>>, %arg9: memref<1x300xf32, #tpu.memory_space<vmem>>, %arg10: memref<8x300xf32, #tpu.memory_space<vmem>>) attributes {dimension_semantics = [#tpu.dimension_semantics<parallel>], iteration_bounds = array<i64: 1>, scalar_prefetch = 0 : i64, scratch_operands = 0 : i64, tpu.core_type = #tpu.core_type<tc>, window_params = [{transform_indices = @transform_0, window_bounds = array<i64: 8, 300>}, {pipeline_mode = #tpu.pipeline_mode<synchronous>, transform_indices = @transform_1, window_bounds = array<i64: 300, 20>}, {pipeline_mode = #tpu.pipeline_mode<synchronous>, transform_indices = @transform_2, window_bounds = array<i64: 1, 20>}, {pipeline_mode = #tpu.pipeline_mode<synchronous>, transform_indices = @transform_3, window_bounds = array<i64: 20, 10>}, {pipeline_mode = #tpu.pipeline_mode<synchronous>, transform_indices = @transform_4, window_bounds = array<i64: 1, 10>}, {pipeline_mode = #tpu.pipeline_mode<synchronous>, transform_indices = @transform_5, window_bounds = array<i64: 10, 20>}, {pipeline_mode = #tpu.pipeline_mode<synchronous>, transform_indices = @transform_6, window_bounds = array<i64: 1, 20>}, {pipeline_mode = #tpu.pipeline_mode<synchronous>, transform_indices = @transform_7, window_bounds = array<i64: 20, 300>}, {pipeline_mode = #tpu.pipeline_mode<synchronous>, transform_indices = @transform_8, window_bounds = array<i64: 1, 300>}, {transform_indices = @transform_9, window_bounds = array<i64: 8, 300>}]} {
    %c0 = arith.constant 0 : index
    %c0_0 = arith.constant 0 : index
    %0 = vector.load %arg1[%c0, %c0_0] : memref<8x300xf32, #tpu.memory_space<vmem>>, vector<8x300xf32>
    %1 = arith.truncf %0 : vector<8x300xf32> to vector<8x300xbf16>
    %c0_1 = arith.constant 0 : index
    %c0_2 = arith.constant 0 : index
    %2 = vector.load %arg2[%c0_1, %c0_2] : memref<300x20xbf16, #tpu.memory_space<vmem>>, vector<300x20xbf16>
    %cst = arith.constant dense<0.000000e+00> : vector<8x20xf32>
    %3 = tpu.matmul %1, %2, %cst {dimension_numbers = #tpu.dot_dimension_numbers<[1], [0], [0], [1], [0, 0, 1, 1], [], []>} : vector<8x300xbf16>, vector<300x20xbf16>, vector<8x20xf32> -> vector<8x20xf32>
    %c0_3 = arith.constant 0 : index
    %c0_4 = arith.constant 0 : index
    %4 = vector.load %arg3[%c0_3, %c0_4] : memref<1x20xf32, #tpu.memory_space<vmem>>, vector<1x20xf32>
    %5 = vector.broadcast %4 : vector<1x20xf32> to vector<8x20xf32>
    %6 = arith.addf %3, %5 : vector<8x20xf32>
    %cst_5 = arith.constant 5.000000e-01 : f32
    %7 = vector.broadcast %cst_5 : f32 to vector<8x20xf32>
    %8 = arith.mulf %7, %6 : vector<8x20xf32>
    %9 = math.tanh %8 : vector<8x20xf32>
    %cst_6 = arith.constant 5.000000e-01 : f32
    %10 = vector.broadcast %cst_6 : f32 to vector<8x20xf32>
    %11 = arith.mulf %10, %9 : vector<8x20xf32>
    %cst_7 = arith.constant 5.000000e-01 : f32
    %12 = vector.broadcast %cst_7 : f32 to vector<8x20xf32>
    %13 = arith.addf %11, %12 : vector<8x20xf32>
    %14 = arith.truncf %13 : vector<8x20xf32> to vector<8x20xbf16>
    %c0_8 = arith.constant 0 : index
    %c0_9 = arith.constant 0 : index
    %15 = vector.load %arg4[%c0_8, %c0_9] : memref<20x10xbf16, #tpu.memory_space<vmem>>, vector<20x10xbf16>
    %cst_10 = arith.constant dense<0.000000e+00> : vector<8x10xf32>
    %16 = tpu.matmul %14, %15, %cst_10 {dimension_numbers = #tpu.dot_dimension_numbers<[1], [0], [0], [1], [0, 0, 1, 1], [], []>} : vector<8x20xbf16>, vector<20x10xbf16>, vector<8x10xf32> -> vector<8x10xf32>
    %c0_11 = arith.constant 0 : index
    %c0_12 = arith.constant 0 : index
    %17 = vector.load %arg5[%c0_11, %c0_12] : memref<1x10xf32, #tpu.memory_space<vmem>>, vector<1x10xf32>
    %18 = vector.broadcast %17 : vector<1x10xf32> to vector<8x10xf32>
    %19 = arith.addf %16, %18 : vector<8x10xf32>
    %cst_13 = arith.constant 5.000000e-01 : f32
    %20 = vector.broadcast %cst_13 : f32 to vector<8x10xf32>
    %21 = arith.mulf %20, %19 : vector<8x10xf32>
    %22 = math.tanh %21 : vector<8x10xf32>
    %cst_14 = arith.constant 5.000000e-01 : f32
    %23 = vector.broadcast %cst_14 : f32 to vector<8x10xf32>
    %24 = arith.mulf %23, %22 : vector<8x10xf32>
    %cst_15 = arith.constant 5.000000e-01 : f32
    %25 = vector.broadcast %cst_15 : f32 to vector<8x10xf32>
    %26 = arith.addf %24, %25 : vector<8x10xf32>
    %27 = arith.truncf %26 : vector<8x10xf32> to vector<8x10xbf16>
    %c0_16 = arith.constant 0 : index
    %c0_17 = arith.constant 0 : index
    %28 = vector.load %arg6[%c0_16, %c0_17] : memref<10x20xbf16, #tpu.memory_space<vmem>>, vector<10x20xbf16>
    %cst_18 = arith.constant dense<0.000000e+00> : vector<8x20xf32>
    %29 = tpu.matmul %27, %28, %cst_18 {dimension_numbers = #tpu.dot_dimension_numbers<[1], [0], [0], [1], [0, 0, 1, 1], [], []>} : vector<8x10xbf16>, vector<10x20xbf16>, vector<8x20xf32> -> vector<8x20xf32>
    %c0_19 = arith.constant 0 : index
    %c0_20 = arith.constant 0 : index
    %30 = vector.load %arg7[%c0_19, %c0_20] : memref<1x20xf32, #tpu.memory_space<vmem>>, vector<1x20xf32>
    %31 = vector.broadcast %30 : vector<1x20xf32> to vector<8x20xf32>
    %32 = arith.addf %29, %31 : vector<8x20xf32>
    %cst_21 = arith.constant 5.000000e-01 : f32
    %33 = vector.broadcast %cst_21 : f32 to vector<8x20xf32>
    %34 = arith.mulf %33, %32 : vector<8x20xf32>
    %35 = math.tanh %34 : vector<8x20xf32>
    %cst_22 = arith.constant 5.000000e-01 : f32
    %36 = vector.broadcast %cst_22 : f32 to vector<8x20xf32>
    %37 = arith.mulf %36, %35 : vector<8x20xf32>
    %cst_23 = arith.constant 5.000000e-01 : f32
    %38 = vector.broadcast %cst_23 : f32 to vector<8x20xf32>
    %39 = arith.addf %37, %38 : vector<8x20xf32>
    %40 = arith.truncf %39 : vector<8x20xf32> to vector<8x20xbf16>
    %c0_24 = arith.constant 0 : index
    %c0_25 = arith.constant 0 : index
    %41 = vector.load %arg8[%c0_24, %c0_25] : memref<20x300xbf16, #tpu.memory_space<vmem>>, vector<20x300xbf16>
    %cst_26 = arith.constant dense<0.000000e+00> : vector<8x300xf32>
    %42 = tpu.matmul %40, %41, %cst_26 {dimension_numbers = #tpu.dot_dimension_numbers<[1], [0], [0], [1], [0, 0, 1, 1], [], []>} : vector<8x20xbf16>, vector<20x300xbf16>, vector<8x300xf32> -> vector<8x300xf32>
    %c0_27 = arith.constant 0 : index
    %c0_28 = arith.constant 0 : index
    %43 = vector.load %arg9[%c0_27, %c0_28] : memref<1x300xf32, #tpu.memory_space<vmem>>, vector<1x300xf32>
    %44 = vector.broadcast %43 : vector<1x300xf32> to vector<8x300xf32>
    %45 = arith.addf %42, %44 : vector<8x300xf32>
    %c0_29 = arith.constant 0 : index
    %c0_30 = arith.constant 0 : index
    %46 = vector.load %arg10[%c0_29, %c0_30] : memref<8x300xf32, #tpu.memory_space<vmem>>, vector<8x300xf32>
    tpu.vector_store %arg10[%c0_29, %c0_30], %45 {strides = array<i32>} : memref<8x300xf32, #tpu.memory_space<vmem>>, vector<8x300xf32>,
    return
  }
  func.func @transform_0(%arg0: i32) -> (i32, i32) {
    %c0_i32 = arith.constant 0 : i32
    %c0_i32_0 = arith.constant 0 : i32
    return %arg0, %c0_i32 : i32, i32
  }
  func.func @transform_1(%arg0: i32) -> (i32, i32) {
    %c0_i32 = arith.constant 0 : i32
    %c0_i32_0 = arith.constant 0 : i32
    %c0_i32_1 = arith.constant 0 : i32
    return %c0_i32, %c0_i32_0 : i32, i32
  }
  func.func @transform_2(%arg0: i32) -> (i32, i32) {
    %c0_i32 = arith.constant 0 : i32
    %c0_i32_0 = arith.constant 0 : i32
    %c0_i32_1 = arith.constant 0 : i32
    return %c0_i32, %c0_i32_0 : i32, i32
  }
  func.func @transform_3(%arg0: i32) -> (i32, i32) {
    %c0_i32 = arith.constant 0 : i32
    %c0_i32_0 = arith.constant 0 : i32
    %c0_i32_1 = arith.constant 0 : i32
    return %c0_i32, %c0_i32_0 : i32, i32
  }
  func.func @transform_4(%arg0: i32) -> (i32, i32) {
    %c0_i32 = arith.constant 0 : i32
    %c0_i32_0 = arith.constant 0 : i32
    %c0_i32_1 = arith.constant 0 : i32
    return %c0_i32, %c0_i32_0 : i32, i32
  }
  func.func @transform_5(%arg0: i32) -> (i32, i32) {
    %c0_i32 = arith.constant 0 : i32
    %c0_i32_0 = arith.constant 0 : i32
    %c0_i32_1 = arith.constant 0 : i32
    return %c0_i32, %c0_i32_0 : i32, i32
  }
  func.func @transform_6(%arg0: i32) -> (i32, i32) {
    %c0_i32 = arith.constant 0 : i32
    %c0_i32_0 = arith.constant 0 : i32
    %c0_i32_1 = arith.constant 0 : i32
    return %c0_i32, %c0_i32_0 : i32, i32
  }
  func.func @transform_7(%arg0: i32) -> (i32, i32) {
    %c0_i32 = arith.constant 0 : i32
    %c0_i32_0 = arith.constant 0 : i32
    %c0_i32_1 = arith.constant 0 : i32
    return %c0_i32, %c0_i32_0 : i32, i32
  }
  func.func @transform_8(%arg0: i32) -> (i32, i32) {
    %c0_i32 = arith.constant 0 : i32
    %c0_i32_0 = arith.constant 0 : i32
    %c0_i32_1 = arith.constant 0 : i32
    return %c0_i32, %c0_i32_0 : i32, i32
  }
  func.func @transform_9(%arg0: i32) -> (i32, i32) {
    %c0_i32 = arith.constant 0 : i32
    %c0_i32_0 = arith.constant 0 : i32
    return %arg0, %c0_i32 : i32, i32
  }
}

</mosaic_0001>

<llo_original>
// kernel: tpu_custom_call.1
$region0: #{tpu_custom_call.1}
  #allocation0 [shape = 'u32[]', space=smem, size = 0x4, offset = 0x4, fixed_abs, tag = 'smem constant byte address 0x4 - core index']
  #allocation1 [shape = 'u32[72,128]{1,0:T(1,128)}', space=vmem, size = 0x9000, scoped, tag = 'internal scratch']
  %s0 = inlined_call_operand.vmem [shape: f32[8,300], index: 0, kind: input, shape index: {}]
  %s1 = inlined_call_operand.vmem [shape: bf16[300,20], index: 1, kind: input, shape index: {}]
  %s2 = inlined_call_operand.vmem [shape: f32[1,20], index: 2, kind: input, shape index: {}]
  %s3 = inlined_call_operand.vmem [shape: bf16[20,10], index: 3, kind: input, shape index: {}]
  %s4 = inlined_call_operand.vmem [shape: f32[1,10], index: 4, kind: input, shape index: {}]
  %s5 = inlined_call_operand.vmem [shape: bf16[10,20], index: 5, kind: input, shape index: {}]
  %s6 = inlined_call_operand.vmem [shape: f32[1,20], index: 6, kind: input, shape index: {}]
  %s7 = inlined_call_operand.vmem [shape: bf16[20,300], index: 7, kind: input, shape index: {}]
  %s8 = inlined_call_operand.vmem [shape: f32[1,300], index: 8, kind: input, shape index: {}]
  %s9 = inlined_call_operand.hbm [shape: f32[8,300], index: 9, kind: output, shape index: {}]
  %s10 = sld [smem:[#allocation0]]
  $region46: #{tpu_custom_call.1} parent=0
    _
  %s12 = ssub.s32 1, %s10
  %s13 = scalar_select 0, %s12, %s10
  $region1: #{tpu_custom_call.1} parent=0
    #allocation2 [shape = 'u8[12288]{0}', space=vmem, size = 0x3000, scoped, tag = 'output window, operand 0, single buffered']
    #allocation3 [shape = 's32[1]{0}', space=sflag, size = 0x4, scoped, tag = 'scoped memory for tpu_custom_call.1']
    %14 = vsyncpa [#allocation3], 0
    // Predicated region
    $region2: #{tpu_custom_call.1} parent=1 // pred_check
      _
    $region3: #{tpu_custom_call.1} parent=1 // pred_check_branch
      %16 = sbr.rel (0) target = $region5
    $region4: #{tpu_custom_call.1} parent=1 // pred_region
      _
    $region5: #{tpu_custom_call.1} parent=1 // pred_fallthru
      _
    // Predicated region
    $region6: #{tpu_custom_call.1} parent=1 // pred_check
      _
    $region7: #{tpu_custom_call.1} parent=1 // pred_check_branch
      %18 = sbr.rel (0) target = $region9
    $region8: #{tpu_custom_call.1} parent=1 // pred_region
      _
    $region9: #{tpu_custom_call.1} parent=1 // pred_fallthru
      _
    // Predicated region
    $region10: #{tpu_custom_call.1} parent=1 // pred_check
      _
    $region11: #{tpu_custom_call.1} parent=1 // pred_check_branch
      %20 = sbr.rel (0) target = $region13
    $region12: #{tpu_custom_call.1} parent=1 // pred_region
      _
    $region13: #{tpu_custom_call.1} parent=1 // pred_fallthru
      _
    // Predicated region
    $region14: #{tpu_custom_call.1} parent=1 // pred_check
      _
    $region15: #{tpu_custom_call.1} parent=1 // pred_check_branch
      %22 = sbr.rel (0) target = $region17
    $region16: #{tpu_custom_call.1} parent=1 // pred_region
      _
    $region17: #{tpu_custom_call.1} parent=1 // pred_fallthru
      _
    // Predicated region
    $region18: #{tpu_custom_call.1} parent=1 // pred_check
      _
    $region19: #{tpu_custom_call.1} parent=1 // pred_check_branch
      %24 = sbr.rel (0) target = $region21
    $region20: #{tpu_custom_call.1} parent=1 // pred_region
      _
    $region21: #{tpu_custom_call.1} parent=1 // pred_fallthru
      _
    // Predicated region
    $region22: #{tpu_custom_call.1} parent=1 // pred_check
      _
    $region23: #{tpu_custom_call.1} parent=1 // pred_check_branch
      %26 = sbr.rel (0) target = $region25
    $region24: #{tpu_custom_call.1} parent=1 // pred_region
      _
    $region25: #{tpu_custom_call.1} parent=1 // pred_fallthru
      _
    // Predicated region
    $region26: #{tpu_custom_call.1} parent=1 // pred_check
      _
    $region27: #{tpu_custom_call.1} parent=1 // pred_check_branch
      %28 = sbr.rel (0) target = $region29
    $region28: #{tpu_custom_call.1} parent=1 // pred_region
      _
    $region29: #{tpu_custom_call.1} parent=1 // pred_fallthru
      _
    // Predicated region
    $region30: #{tpu_custom_call.1} parent=1 // pred_check
      _
    $region31: #{tpu_custom_call.1} parent=1 // pred_check_branch
      %30 = sbr.rel (0) target = $region33
    $region32: #{tpu_custom_call.1} parent=1 // pred_region
      _
    $region33: #{tpu_custom_call.1} parent=1 // pred_fallthru
      _
    // Predicated region
    $region34: #{tpu_custom_call.1} parent=1 // pred_check
      _
    $region35: #{tpu_custom_call.1} parent=1 // pred_check_branch
      %32 = sbr.rel (0) target = $region37
    $region36: #{tpu_custom_call.1} parent=1 // pred_region
      _
    $region37: #{tpu_custom_call.1} parent=1 // pred_fallthru
      _
    %v34 = vld [vmem:[%s0] sm:$0xff]
    %v35 = vld [vmem:[%s0 + $0x8] sm:$0xff]
    %v36 = vld [vmem:[%s0 + $0x10] sm:$0xff]
    %v37 = vpack.c.bf16 %v34, %v34
    %v38 = vpack.c.bf16 %v35, %v35
    %v39 = vpack.c.bf16 %v36, %v36
    %v40 = vld [vmem:[%s1] sm:$0xf]
    %v41 = vld [vmem:[%s1 + $0x4] sm:$0xf]
    %v42 = vld [vmem:[%s1 + $0x8] sm:$0xf]
    %v43 = vld [vmem:[%s1 + $0xc] sm:$0xf]
    %v44 = vld [vmem:[%s1 + $0x10] sm:$0xf]
    %v45 = vld [vmem:[%s1 + $0x14] sm:$0xf]
    %v46 = vld [vmem:[%s1 + $0x18] sm:$0xf]
    %v47 = vld [vmem:[%s1 + $0x1c] sm:$0xf]
    %v48 = vld [vmem:[%s1 + $0x20] sm:$0xf]
    %v49 = vld [vmem:[%s1 + $0x24] sm:$0xf]
    %v50 = vld [vmem:[%s1 + $0x28] sm:$0xf]
    %v51 = vld [vmem:[%s1 + $0x2c] sm:$0xf]
    %v52 = vld [vmem:[%s1 + $0x30] sm:$0xf]
    %v53 = vld [vmem:[%s1 + $0x34] sm:$0xf]
    %v54 = vld [vmem:[%s1 + $0x38] sm:$0xf]
    %v55 = vld [vmem:[%s1 + $0x3c] sm:$0xf]
    %v56 = vld [vmem:[%s1 + $0x40] sm:$0xf]
    %v57 = vld [vmem:[%s1 + $0x44] sm:$0xf]
    %v58 = vld [vmem:[%s1 + $0x48] sm:$0xf]
    %v59 = vld [vmem:[%s1 + $0x4c] sm:$0xf]
    %v60 = vld [vmem:[%s1 + $0x50] sm:$0xf]
    %v61 = vld [vmem:[%s1 + $0x54] sm:$0xf]
    %v62 = vld [vmem:[%s1 + $0x58] sm:$0xf]
    %v63 = vld [vmem:[%s1 + $0x5c] sm:$0xf]
    %v64 = vld [vmem:[%s1 + $0x60] sm:$0xf]
    %v65 = vld [vmem:[%s1 + $0x64] sm:$0xf]
    %v66 = vld [vmem:[%s1 + $0x68] sm:$0xf]
    %v67 = vld [vmem:[%s1 + $0x6c] sm:$0xf]
    %v68 = vld [vmem:[%s1 + $0x70] sm:$0xf]
    %v69 = vld [vmem:[%s1 + $0x74] sm:$0xf]
    %v70 = vld [vmem:[%s1 + $0x78] sm:$0xf]
    %v71 = vld [vmem:[%s1 + $0x7c] sm:$0xf]
    %v72 = vld [vmem:[%s1 + $0x80] sm:$0xf]
    %v73 = vld [vmem:[%s1 + $0x84] sm:$0xf]
    %v74 = vld [vmem:[%s1 + $0x88] sm:$0xf]
    %v75 = vld [vmem:[%s1 + $0x8c] sm:$0xf]
    %v76 = vld [vmem:[%s1 + $0x90] sm:$0xf]
    %v77 = vld [vmem:[%s1 + $0x94] sm:$0x3]
    %v78 = vld [vmem:[%s2] sm:$0x1]
    %v80 = vperm.slane %v78, 0
    %v120 = vunpack.c.l.b16 %v40
    %v121 = vunpack.c.l.b16 %v41
    %v122 = vunpack.c.l.b16 %v42
    %v123 = vunpack.c.l.b16 %v43
    %v124 = vunpack.c.l.b16 %v44
    %v125 = vunpack.c.l.b16 %v45
    %v126 = vunpack.c.l.b16 %v46
    %v127 = vunpack.c.l.b16 %v47
    %v128 = vunpack.c.l.b16 %v48
    %v129 = vunpack.c.l.b16 %v49
    %v130 = vunpack.c.l.b16 %v50
    %v131 = vunpack.c.l.b16 %v51
    %v132 = vunpack.c.l.b16 %v52
    %v133 = vunpack.c.l.b16 %v53
    %v134 = vunpack.c.l.b16 %v54
    %v135 = vunpack.c.l.b16 %v55
    %v136 = vunpack.c.l.b16 %v56
    %v137 = vunpack.c.l.b16 %v57
    %v138 = vunpack.c.l.b16 %v58
    %v139 = vunpack.c.l.b16 %v59
    %v140 = vunpack.c.l.b16 %v60
    %v141 = vunpack.c.l.b16 %v61
    %v142 = vunpack.c.l.b16 %v62
    %v143 = vunpack.c.l.b16 %v63
    %v144 = vunpack.c.l.b16 %v64
    %v145 = vunpack.c.l.b16 %v65
    %v146 = vunpack.c.l.b16 %v66
    %v147 = vunpack.c.l.b16 %v67
    %v148 = vunpack.c.l.b16 %v68
    %v149 = vunpack.c.l.b16 %v69
    %v150 = vunpack.c.l.b16 %v70
    %v151 = vunpack.c.l.b16 %v71
    %v152 = vunpack.c.l.b16 %v72
    %v153 = vunpack.c.l.b16 %v73
    %v154 = vunpack.c.l.b16 %v74
    %v155 = vunpack.c.l.b16 %v75
    %v156 = vunpack.c.l.b16 %v76
    %v157 = vunpack.c.l.b16 %v77
    %v158 = vpack.c.b16 %v121, %v120
    %v159 = vpack.c.b16 %v123, %v122
    %v160 = vpack.c.b16 %v125, %v124
    %v161 = vpack.c.b16 %v127, %v126
    %v162 = vpack.c.b16 %v129, %v128
    %v163 = vpack.c.b16 %v131, %v130
    %v164 = vpack.c.b16 %v133, %v132
    %v165 = vpack.c.b16 %v135, %v134
    %v166 = vpack.c.b16 %v137, %v136
    %v167 = vpack.c.b16 %v139, %v138
    %v168 = vpack.c.b16 %v141, %v140
    %v169 = vpack.c.b16 %v143, %v142
    %v170 = vpack.c.b16 %v145, %v144
    %v171 = vpack.c.b16 %v147, %v146
    %v172 = vpack.c.b16 %v149, %v148
    %v173 = vpack.c.b16 %v151, %v150
    %v174 = vpack.c.b16 %v153, %v152
    %v175 = vpack.c.b16 %v155, %v154
    %v176 = vpack.c.b16 %v157, %v156
    %vm195 = vcmask 359424
    %v197 = vsel %vm195, %v39, 0
    %vm199 = vcmask 1045504
    %v201 = vsel %vm199, %v176, 0
    %203 = vmatpush.bf16.msra.mxu0 %v165
    %204 = vmatpush.bf16.msra.mxu0 %v164
    %205 = vmatpush.bf16.msra.mxu0 %v163
    %206 = vmatpush.bf16.msra.mxu0 %v162
    %207 = vmatpush.bf16.msra.mxu0 %v161
    %208 = vmatpush.bf16.msra.mxu0 %v160
    %209 = vmatpush.bf16.msra.mxu0 %v159
    %210 = vmatpush.bf16.msra.mxu0 %v158
    %211 = vmatmul.bf16.gmra.mxu0 %v37
    %v212 = vpop.f32.mrf.mxu0
    %v213 = vadd.f32 %v80, %v212
    %v214 = vpop.f32.mrf.mxu0
    %215 = vdwg.mxu0
    %216 = vmatpush.bf16.msra.mxu0 %v173
    %217 = vmatpush.bf16.msra.mxu0 %v172
    %218 = vmatpush.bf16.msra.mxu0 %v171
    %219 = vmatpush.bf16.msra.mxu0 %v170
    %220 = vmatpush.bf16.msra.mxu0 %v169
    %221 = vmatpush.bf16.msra.mxu0 %v168
    %222 = vmatpush.bf16.msra.mxu0 %v167
    %223 = vmatpush.bf16.msra.mxu0 %v166
    %224 = vmatmul.bf16.gmra.mxu0 %v38
    %v225 = vpop.f32.mrf.mxu0
    %v226 = vadd.f32 %v213, %v225
    %v227 = vpop.f32.mrf.mxu0
    %228 = vdwg.mxu0
    %229 = vmatpush.bf16.msra.mxu0 0
    %230 = vmatpush.bf16.msra.mxu0 0
    %231 = vmatpush.bf16.msra.mxu0 0
    %232 = vmatpush.bf16.msra.mxu0 0
    %233 = vmatpush.bf16.msra.mxu0 0
    %234 = vmatpush.bf16.msra.mxu0 %v201
    %235 = vmatpush.bf16.msra.mxu0 %v175
    %236 = vmatpush.bf16.msra.mxu0 %v174
    %237 = vmatmul.bf16.gmra.mxu0 %v197
    %v238 = vpop.f32.mrf.mxu0
    %v239 = vadd.f32 %v226, %v238
    %v240 = vpop.f32.mrf.mxu0
    %241 = vdwg.mxu0
    %v242 = vmul.f32 %v239, 0.5
    %v243 = vtanh.pop %v242
    %v244 = vmul.f32 %v243, 0.5
    %v245 = vadd.f32 %v244, 0.5
    %v246 = vpack.c.bf16 %v245, %v245
    %v247 = vld [vmem:[%s3] sm:$0xf]
    %v248 = vld [vmem:[%s3 + $0x4] sm:$0xf]
    %v249 = vld [vmem:[%s3 + $0x8] sm:$0x3]
    %v250 = vld [vmem:[%s4] sm:$0x1]
    %v252 = vperm.slane %v250, 0
    %v257 = vunpack.c.l.b16 %v247
    %v258 = vunpack.c.l.b16 %v248
    %v259 = vunpack.c.l.b16 %v249
    %v260 = vpack.c.b16 %v258, %v257
    %v261 = vpack.c.b16 %v259, %v259
    %vm263 = vcmask 162816
    %v265 = vsel %vm263, %v246, 0
    %vm267 = vcmask 1041408
    %v269 = vsel %vm267, %v261, 0
    %271 = vmatpush.bf16.msra.mxu0 0
    %272 = vmatpush.bf16.msra.mxu0 0
    %273 = vmatpush.bf16.msra.mxu0 0
    %274 = vmatpush.bf16.msra.mxu0 0
    %275 = vmatpush.bf16.msra.mxu0 0
    %276 = vmatpush.bf16.msra.mxu0 0
    %277 = vmatpush.bf16.msra.mxu0 %v269
    %278 = vmatpush.bf16.msra.mxu0 %v260
    %279 = vmatmul.bf16.gmra.mxu0 %v265
    %v280 = vpop.f32.mrf.mxu0
    %v281 = vadd.f32 %v252, %v280
    %v282 = vpop.f32.mrf.mxu0
    %283 = vdwg.mxu0
    %v284 = vmul.f32 %v281, 0.5
    %v285 = vtanh.pop %v284
    %v286 = vmul.f32 %v285, 0.5
    %v287 = vadd.f32 %v286, 0.5
    %v288 = vpack.c.bf16 %v287, %v287
    %v289 = vld [vmem:[%s5] sm:$0xf]
    %v290 = vld [vmem:[%s5 + $0x4] sm:$0x1]
    %v291 = vld [vmem:[%s6] sm:$0x1]
    %v293 = vperm.slane %v291, 0
    %v297 = vunpack.c.l.b16 %v289
    %v298 = vunpack.c.l.b16 %v290
    %v299 = vpack.c.b16 %v298, %v297
    %vm300 = vcmask 80896
    %v302 = vsel %vm300, %v288, 0
    %vm304 = vcmask 1044480
    %v306 = vsel %vm304, %v299, 0
    %308 = vmatpush.bf16.msra.mxu0 0
    %309 = vmatpush.bf16.msra.mxu0 0
    %310 = vmatpush.bf16.msra.mxu0 0
    %311 = vmatpush.bf16.msra.mxu0 0
    %312 = vmatpush.bf16.msra.mxu0 0
    %313 = vmatpush.bf16.msra.mxu0 0
    %314 = vmatpush.bf16.msra.mxu0 0
    %315 = vmatpush.bf16.msra.mxu0 %v306
    %316 = vmatmul.bf16.gmra.mxu0 %v302
    %v317 = vpop.f32.mrf.mxu0
    %v318 = vadd.f32 %v293, %v317
    %v319 = vpop.f32.mrf.mxu0
    %320 = vdwg.mxu0
    %v321 = vmul.f32 %v318, 0.5
    %v322 = vtanh.pop %v321
    %v323 = vmul.f32 %v322, 0.5
    %v324 = vadd.f32 %v323, 0.5
    %v325 = vpack.c.bf16 %v324, %v324
    %v326 = vld [vmem:[%s7] sm:$0xff]
    %v327 = vld [vmem:[%s7 + $0x8] sm:$0xf]
    %v328 = vld [vmem:[%s7 + $0xc] sm:$0xff]
    %v329 = vld [vmem:[%s7 + $0x14] sm:$0xf]
    %v330 = vld [vmem:[%s7 + $0x18] sm:$0x33]
    %v331 = vld [vmem:[%s7 + $0x20] sm:$0x3]
    %v332 = vld [vmem:[%s8] sm:$0x7]
    %v334 = vperm.slane %v332, 0
    %v335 = vperm.slane %v332, 1
    %v336 = vperm.slane %v332, 2
    %v346 = vunpack.c.l.b16 %v326
    %v347 = vunpack.c.h.b16 %v326
    %v348 = vunpack.c.l.b16 %v327
    %v349 = vunpack.c.l.b16 %v328
    %v350 = vunpack.c.h.b16 %v328
    %v351 = vunpack.c.l.b16 %v329
    %v352 = vunpack.c.l.b16 %v330
    %v353 = vunpack.c.h.b16 %v330
    %v354 = vunpack.c.l.b16 %v331
    %v355 = vpack.c.b16 %v349, %v346
    %v356 = vpack.c.b16 %v350, %v347
    %v357 = vpack.c.b16 %v351, %v348
    %v358 = vpack.c.b16 %v352, %v352
    %v359 = vpack.c.b16 %v353, %v353
    %v360 = vpack.c.b16 %v354, %v354
    %v365 = vsel %vm263, %v325, 0
    %v368 = vsel %vm267, %v358, 0
    %v371 = vsel %vm267, %v359, 0
    %v374 = vsel %vm267, %v360, 0
    %376 = vmatpush.bf16.msra.mxu0 0
    %377 = vmatpush.bf16.msra.mxu0 0
    %378 = vmatpush.bf16.msra.mxu0 0
    %379 = vmatpush.bf16.msra.mxu0 0
    %380 = vmatpush.bf16.msra.mxu0 0
    %381 = vmatpush.bf16.msra.mxu0 0
    %382 = vmatpush.bf16.msra.mxu0 %v368
    %383 = vmatpush.bf16.msra.mxu0 %v355
    %384 = vmatmul.bf16.gmra.mxu0 %v365
    %v385 = vpop.f32.mrf.mxu0
    %v386 = vadd.f32 %v334, %v385
    %v387 = vpop.f32.mrf.mxu0
    %388 = vdwg.mxu0
    %389 = vmatpush.bf16.msra.mxu0 0
    %390 = vmatpush.bf16.msra.mxu0 0
    %391 = vmatpush.bf16.msra.mxu0 0
    %392 = vmatpush.bf16.msra.mxu0 0
    %393 = vmatpush.bf16.msra.mxu0 0
    %394 = vmatpush.bf16.msra.mxu0 0
    %395 = vmatpush.bf16.msra.mxu0 %v371
    %396 = vmatpush.bf16.msra.mxu0 %v356
    %397 = vmatmul.bf16.gmra.mxu0 %v365
    %v398 = vpop.f32.mrf.mxu0
    %v399 = vadd.f32 %v335, %v398
    %v400 = vpop.f32.mrf.mxu0
    %401 = vdwg.mxu0
    %402 = vmatpush.bf16.msra.mxu0 0
    %403 = vmatpush.bf16.msra.mxu0 0
    %404 = vmatpush.bf16.msra.mxu0 0
    %405 = vmatpush.bf16.msra.mxu0 0
    %406 = vmatpush.bf16.msra.mxu0 0
    %407 = vmatpush.bf16.msra.mxu0 0
    %408 = vmatpush.bf16.msra.mxu0 %v374
    %409 = vmatpush.bf16.msra.mxu0 %v357
    %410 = vmatmul.bf16.gmra.mxu0 %v365
    %v411 = vpop.f32.mrf.mxu0
    %v412 = vadd.f32 %v336, %v411
    %v413 = vpop.f32.mrf.mxu0
    %414 = vdwg.mxu0
    %415 = vst [vmem:[#allocation2] sm:$0xff] %v386
    %416 = vst [vmem:[#allocation2 + $0x8] sm:$0xff] %v399
    %417 = vst.msk [vmem:[#allocation2 + $0x10] sm:$0xff] %vm195, %v412
    // Predicated region
    $region38: #{tpu_custom_call.1} parent=1 // pred_check
      _
    $region39: #{tpu_custom_call.1} parent=1 // pred_check_branch
      %419 = sbr.rel (0) target = $region41
    $region40: #{tpu_custom_call.1} parent=1 // pred_region
      %421 = vsyncadd [#allocation3], 0
      %s423 = sshll.u32 [#allocation2], 4
      %s424 = int_to_ptr.vmem [resolvable:$true] %s423
      %s425 = sshll.u32 %s9, 4
      %s426 = int_to_ptr.hbm [resolvable:$true] %s425
      %428 = dma.vmem_to_hbm [thread:$0]  %s424, 384, %s426, [#allocation3]
    $region41: #{tpu_custom_call.1} parent=1 // pred_fallthru
      _
    // Predicated region
    $region42: #{tpu_custom_call.1} parent=1 // pred_check
      _
    $region43: #{tpu_custom_call.1} parent=1 // pred_check_branch
      %430 = sbr.rel (0) target = $region45
    $region44: #{tpu_custom_call.1} parent=1 // pred_region
      %432 = dma.done [#allocation3], 384
    $region45: #{tpu_custom_call.1} parent=1 // pred_fallthru
      _
    %433 = vsyncpa [#allocation3], 1

</llo_original>
